<compile_context>
chip_gen: v5e
topology: v5e:2x2
jax: 0.10.0
libtpu: 0.0.40
codegen_flags: <defaults>
</compile_context>

<pallas_src>
import functools

import jax
import jax.numpy as jnp
from jax.experimental import pallas as pl
from jax.experimental.pallas import tpu as pltpu

_LANE = 128      # TPU lane width (last dim)
_SUBLANE = 8     # f32 sublane packing (second-to-last dim)


def _round_up(x, m):
    return ((x + m - 1) // m) * m


def _vmem_capacity_bytes(default=64 * 1024 * 1024):
    """Physical VMEM per core; conservative 64 MiB fallback if the query fails."""
    try:
        info = pltpu.get_tpu_info()
        return int(getattr(info, "vmem_capacity_bytes", default))
    except Exception:
        return default


def _budgets(target_block_bytes):
    cap = _vmem_capacity_bytes()
    # 64 MiB scoped limit on 128-MiB parts (v5e/v6e), 48 MiB on 64-MiB parts (v7x).
    vmem_limit = min(cap * 3 // 4, 64 * 1024 * 1024)
    if target_block_bytes is None:
        target_block_bytes = 4 * 1024 * 1024   # amortizes the ~0.35 us/step overhead
    return target_block_bytes, vmem_limit


def _choose_block_s(c_pad, S, itemsize, target_bytes):
    """Spatial (lane) block length: multiple of 128, sized to ~target_bytes."""
    bs = max(_LANE, (target_bytes // (c_pad * itemsize)) // _LANE * _LANE)
    return min(bs, _round_up(S, _LANE))


# ---------------------------------------------------------------------------
# Two-pass path, pass 1: streaming global-sum reduction over (1, C, TS) blocks.
# ---------------------------------------------------------------------------
def _pool_kernel(mm_ref, sm_ref, mm_sum_ref, sm_sum_ref, mm_acc, sm_acc,
                 *, s_total, block_s):
    s = pl.program_id(1)
    n_s = pl.num_programs(1)

    @pl.when(s == 0)
    def _():
        mm_acc[...] = jnp.zeros_like(mm_acc)
        sm_acc[...] = jnp.zeros_like(sm_acc)

    def _accumulate(mask_tail):
        mm = mm_ref[...].astype(jnp.float32)          # (1, C, TS)
        sm = sm_ref[...].astype(jnp.float32)
        if mask_tail:
            # Partial last block: zero out lanes beyond the true spatial extent so
            # the pooled sums stay exact (the OOB region of the VMEM buffer is garbage).
            lane = jax.lax.broadcasted_iota(jnp.int32, mm.shape, 2)
            valid = (s * block_s + lane) < s_total
            mm = jnp.where(valid, mm, 0.0)
            sm = jnp.where(valid, sm, 0.0)
        # Lane-axis reduce: vreg adds across lane tiles + a short cross-lane tail
        # per 8-channel group; accumulated in a VMEM scratch (not the output ref).
        mm_acc[...] += jnp.sum(mm, axis=2, keepdims=True)
        sm_acc[...] += jnp.sum(sm, axis=2, keepdims=True)

    if s_total % block_s == 0:
        _accumulate(False)                    # no ragged tail: never mask
    else:
        @pl.when(s != n_s - 1)
        def _():
            _accumulate(False)

        @pl.when(s == n_s - 1)
        def _():
            _accumulate(True)

    # Single HBM-visible store per (b): write the accumulator on the last step only.
    @pl.when(s == n_s - 1)
    def _():
        mm_sum_ref[...] = mm_acc[...]
        sm_sum_ref[...] = sm_acc[...]


# ---------------------------------------------------------------------------
# Two-pass path, pass 2: streaming elementwise combine  out = g_mm*mm + g_sm*sm.
# ---------------------------------------------------------------------------
def _combine_kernel(g_mm_ref, g_sm_ref, mm_ref, sm_ref, out_ref):
    g_mm = g_mm_ref[...].astype(jnp.float32)          # (1, C, 1) -> lane-broadcast
    g_sm = g_sm_ref[...].astype(jnp.float32)
    out = (g_mm * mm_ref[...].astype(jnp.float32)
           + g_sm * sm_ref[...].astype(jnp.float32))
    out_ref[...] = out.astype(out_ref.dtype)          # partial tail block: write clipped


# ---------------------------------------------------------------------------
# Fused path: pooled means + gate MLPs + combine in a single kernel (grid over B),
# so each input is read from HBM exactly once (3 full-array HBM passes total).
# ---------------------------------------------------------------------------
def _fused_kernel(w1t_mm_a, w1t_mm_b, b1_mm, w2_mm, b2_mm,
                  w1t_sm_a, w1t_sm_b, b1_sm, w2_sm, b2_sm,
                  mm_ref, sm_ref, out_ref, *, inv_s):
    mm = mm_ref[...].astype(jnp.float32)              # (1, C, S) -- full spatial extent
    sm = sm_ref[...].astype(jnp.float32)

    # Global average pool (exact: the block is the full logical array slice).
    p_mm = (jnp.sum(mm, axis=2, keepdims=True) * inv_s)[0]    # (C, 1) column
    p_sm = (jnp.sum(sm, axis=2, keepdims=True) * inv_s)[0]    # (C, 1)

    def gate(w1t_a, w1t_b, b1, w2, b2):
        # Layer 1: h[j] = sum_i W1[j, i] * p_mm[i] + W1[j, C+i] * p_sm[i] + b1[j]
        #   w1t_a = W1[:, :C].T, w1t_b = W1[:, C:].T  (pre-arranged in the wrapper),
        #   so this is a lane-broadcast multiply + cross-sublane reduce (no matmul).
        prod1 = w1t_a[...] * p_mm + w1t_b[...] * p_sm                 # (C, C)
        h = jnp.maximum(jnp.sum(prod1, axis=0, keepdims=True) + b1[...], 0.0)  # (1, C)
        # Layer 2: g[j] = sigmoid(sum_k W2[j, k] * h[k] + b2[j])
        prod2 = w2[...] * h                                            # (C, C)
        z = jnp.sum(prod2, axis=1, keepdims=True) + b2[...]            # (C, 1)
        return 1.0 / (1.0 + jnp.exp(-z))                               # (C, 1)

    g_mm = gate(w1t_mm_a, w1t_mm_b, b1_mm, w2_mm, b2_mm)[None]         # (1, C, 1)
    g_sm = gate(w1t_sm_a, w1t_sm_b, b1_sm, w2_sm, b2_sm)[None]

    out_ref[...] = (g_mm * mm + g_sm * sm).astype(out_ref.dtype)


# ---------------------------------------------------------------------------
# Wrappers.
# ---------------------------------------------------------------------------
def _cra_fused(mm3, sm3, params, *, vmem_limit):
    B, C, S = mm3.shape
    dtype = mm3.dtype
    itemsize = jnp.dtype(dtype).itemsize
    f32 = jnp.float32

    w1_mm = params["fc_mm_w1"].astype(f32)            # (C, 2C)
    w1_sm = params["fc_sm_w1"].astype(f32)
    weight_args = [
        w1_mm[:, :C].T, w1_mm[:, C:].T,
        params["fc_mm_b1"].astype(f32).reshape(1, C),
        params["fc_mm_w2"].astype(f32),
        params["fc_mm_b2"].astype(f32).reshape(C, 1),
        w1_sm[:, :C].T, w1_sm[:, C:].T,
        params["fc_sm_b1"].astype(f32).reshape(1, C),
        params["fc_sm_w2"].astype(f32),
        params["fc_sm_b2"].astype(f32).reshape(C, 1),
    ]

    def full_spec(shape):
        return pl.BlockSpec(shape, lambda b, _n=len(shape): (0,) * _n)

    data_spec = pl.BlockSpec((1, C, S), lambda b: (b, 0, 0))
    in_specs = [full_spec(w.shape) for w in weight_args] + [data_spec, data_spec]

    cost = pl.CostEstimate(
        flops=int(7 * B * C * S + 8 * B * C * C),
        transcendentals=int(2 * B * C),
        bytes_accessed=int(3 * B * C * S * itemsize))

    kernel = functools.partial(_fused_kernel, inv_s=float(1.0 / S))
    return pl.pallas_call(
        kernel,
        out_shape=jax.ShapeDtypeStruct((B, C, S), dtype),
        grid=(B,),
        in_specs=in_specs,
        out_specs=data_spec,
        compiler_params=pltpu.CompilerParams(
            dimension_semantics=("parallel",),
            vmem_limit_bytes=vmem_limit),
        cost_estimate=cost,
    )(*weight_args, mm3, sm3)


def _cra_two_pass(mm3, sm3, params, *, block_s, vmem_limit):
    B, C, S = mm3.shape
    dtype = mm3.dtype
    itemsize = jnp.dtype(dtype).itemsize
    n_s = pl.cdiv(S, block_s)

    data_spec = pl.BlockSpec((1, C, block_s), lambda b, s: (b, 0, s))
    vec_spec = pl.BlockSpec((1, C, 1), lambda b, s: (b, 0, 0))

    # ---- pass 1: pooled sums ------------------------------------------------
    pool_kernel = functools.partial(_pool_kernel, s_total=S, block_s=block_s)
    pool_cost = pl.CostEstimate(
        flops=int(2 * B * C * S), transcendentals=0,
        bytes_accessed=int(2 * B * C * S * itemsize + 2 * B * C * 4))
    mm_sum, sm_sum = pl.pallas_call(
        pool_kernel,
        out_shape=(jax.ShapeDtypeStruct((B, C, 1), jnp.float32),
                   jax.ShapeDtypeStruct((B, C, 1), jnp.float32)),
        grid=(B, n_s),
        in_specs=[data_spec, data_spec],
        out_specs=(vec_spec, vec_spec),
        scratch_shapes=[pltpu.VMEM((1, C, 1), jnp.float32),
                        pltpu.VMEM((1, C, 1), jnp.float32)],
        compiler_params=pltpu.CompilerParams(
            dimension_semantics=("parallel", "arbitrary"),
            vmem_limit_bytes=vmem_limit),
        cost_estimate=pool_cost,
    )(mm3, sm3)

    # ---- tiny gate MLPs in plain JAX (O(B*C^2), negligible) ----------------
    p_mm = mm_sum[:, :, 0] / jnp.float32(S)
    p_sm = sm_sum[:, :, 0] / jnp.float32(S)
    aef = jnp.concatenate([p_mm, p_sm], axis=-1)       # (B, 2C)

    def mlp(x, w1, b1, w2, b2):
        h = jnp.maximum(x @ w1.T + b1, 0.0)
        return jax.nn.sigmoid(h @ w2.T + b2)

    g_mm = mlp(aef, params["fc_mm_w1"], params["fc_mm_b1"],
               params["fc_mm_w2"], params["fc_mm_b2"])
    g_sm = mlp(aef, params["fc_sm_w1"], params["fc_sm_b1"],
               params["fc_sm_w2"], params["fc_sm_b2"])
    g_mm3 = g_mm.astype(jnp.float32).reshape(B, C, 1)
    g_sm3 = g_sm.astype(jnp.float32).reshape(B, C, 1)

    # ---- pass 2: streaming combine ------------------------------------------
    combine_cost = pl.CostEstimate(
        flops=int(3 * B * C * S), transcendentals=0,
        bytes_accessed=int(3 * B * C * S * itemsize + 2 * B * C * 4))
    return pl.pallas_call(
        _combine_kernel,
        out_shape=jax.ShapeDtypeStruct((B, C, S), dtype),
        grid=(B, n_s),
        in_specs=[vec_spec, vec_spec, data_spec, data_spec],
        out_specs=data_spec,
        compiler_params=pltpu.CompilerParams(
            dimension_semantics=("parallel", "parallel"),
            vmem_limit_bytes=vmem_limit),
        cost_estimate=combine_cost,
    )(g_mm3, g_sm3, mm3, sm3)


def cra_forward(fea_mm, fea_sm, params, *, target_block_bytes=None,
                force_two_pass=False):
    """fea_mm, fea_sm: (B, C, D, H, W). Returns (B, C, D, H, W)."""
    assert fea_mm.shape == fea_sm.shape
    B, C, D, H, W = fea_mm.shape
    S = D * H * W
    dtype = fea_mm.dtype
    itemsize = jnp.dtype(dtype).itemsize

    # Free, contiguous reshape -- no padding, no copies.
    mm3 = fea_mm.reshape(B, C, S)
    sm3 = fea_sm.reshape(B, C, S)

    target_bytes, vmem_limit = _budgets(target_block_bytes)

    c_pad = _round_up(max(C, 1), _SUBLANE)
    s_pad = _round_up(S, _LANE)
    slab_bytes = c_pad * s_pad * itemsize                       # one (1, C, S) VMEM block
    weight_bytes = 2 * (6 * c_pad * _round_up(C, _LANE) * 4 + 4 * c_pad * _LANE * 4)
    fused_bytes = 3 * 2 * slab_bytes + weight_bytes + (1 << 20)  # 3 slabs, double-buffered

    if (not force_two_pass) and fused_bytes <= vmem_limit:
        out3 = _cra_fused(mm3, sm3, params, vmem_limit=vmem_limit)
    else:
        block_s = _choose_block_s(c_pad, S, itemsize, target_bytes)
        # Combine streams 3 big blocks, each double-buffered.
        if 6 * c_pad * block_s * itemsize > vmem_limit:
            raise ValueError(
                f"CRA: channel count C={C} too large for an un-tiled (1, C, block_s) "
                f"block within the VMEM budget ({vmem_limit} bytes); a channel-tiled "
                f"grid would be required for this configuration.")
        out3 = _cra_two_pass(mm3, sm3, params, block_s=block_s, vmem_limit=vmem_limit)

    return out3.reshape(B, C, D, H, W)


# ---------------------------------------------------------------------------
# Pure-JAX reference matching the PyTorch forward exactly.
# ---------------------------------------------------------------------------
def cra_reference(fea_mm, fea_sm, params):
    fea = jnp.concatenate([fea_mm, fea_sm], axis=1)             # (B, 2C, D, H, W)
    aef = jnp.mean(fea, axis=(2, 3, 4))                         # (B, 2C)

    def mlp(x, w1, b1, w2, b2):
        h = jnp.maximum(x @ w1.T + b1, 0.0)
        return jax.nn.sigmoid(h @ w2.T + b2)

    g_mm = mlp(aef, params["fc_mm_w1"], params["fc_mm_b1"],
               params["fc_mm_w2"], params["fc_mm_b2"])
    g_sm = mlp(aef, params["fc_sm_w1"], params["fc_sm_b1"],
               params["fc_sm_w2"], params["fc_sm_b2"])
    g_mm = g_mm[:, :, None, None, None]
    g_sm = g_sm[:, :, None, None, None]
    return g_mm * fea_mm + g_sm * fea_sm


def init_params(key, ch_num):
    C = ch_num
    ks = jax.random.split(key, 8)
    scale = 0.2
    return {
        "fc_mm_w1": scale * jax.random.normal(ks[0], (C, 2 * C), jnp.float32),
        "fc_mm_b1": scale * jax.random.normal(ks[1], (C,), jnp.float32),
        "fc_mm_w2": scale * jax.random.normal(ks[2], (C, C), jnp.float32),
        "fc_mm_b2": scale * jax.random.normal(ks[3], (C,), jnp.float32),
        "fc_sm_w1": scale * jax.random.normal(ks[4], (C, 2 * C), jnp.float32),
        "fc_sm_b1": scale * jax.random.normal(ks[5], (C,), jnp.float32),
        "fc_sm_w2": scale * jax.random.normal(ks[6], (C, C), jnp.float32),
        "fc_sm_b2": scale * jax.random.normal(ks[7], (C,), jnp.float32),
    }


if __name__ == "__main__":
    root = jax.random.PRNGKey(0)

    def run_case(case_key, shape, **kw):
        B, C, D, H, W = shape
        k_mm, k_sm, k_p = jax.random.split(case_key, 3)
        fea_mm = jax.random.normal(k_mm, shape, jnp.float32)
        fea_sm = jax.random.normal(k_sm, shape, jnp.float32)
        params = init_params(k_p, C)
        out = jax.block_until_ready(cra_forward(fea_mm, fea_sm, params, **kw))
        ref = cra_reference(fea_mm, fea_sm, params)
        assert out.shape == shape
        err = float(jnp.max(jnp.abs(out - ref)))
        assert jnp.allclose(out, ref, atol=2e-5, rtol=2e-5), err

    keys = jax.random.split(root, 3)
    # 1) fused single-kernel path (per-batch slab fits VMEM), ragged S = 240.
    run_case(keys[0], (2, 4, 4, 6, 10))
    # 2) forced two-pass streaming path, S = 1800 with a partial tail block (block 512).
    run_case(keys[1], (2, 6, 4, 9, 50),
             force_two_pass=True, target_block_bytes=16 * 1024)
    # 3) two-pass path where S divides the block exactly (unmasked fast trace), B = 1.
    run_case(keys[2], (1, 4, 4, 8, 16),
             force_two_pass=True, target_block_bytes=8 * 1024)

    print("KERNEL_OK")
</pallas_src>

<mosaic_0001>
module attributes {stable_mosaic.version = 11 : i64} {
  func.func @_fused_kernel(%arg0: i32, %arg1: memref<4x4xf32, #tpu.memory_space<vmem>>, %arg2: memref<4x4xf32, #tpu.memory_space<vmem>>, %arg3: memref<1x4xf32, #tpu.memory_space<vmem>>, %arg4: memref<4x4xf32, #tpu.memory_space<vmem>>, %arg5: memref<4x1xf32, #tpu.memory_space<vmem>>, %arg6: memref<4x4xf32, #tpu.memory_space<vmem>>, %arg7: memref<4x4xf32, #tpu.memory_space<vmem>>, %arg8: memref<1x4xf32, #tpu.memory_space<vmem>>, %arg9: memref<4x4xf32, #tpu.memory_space<vmem>>, %arg10: memref<4x1xf32, #tpu.memory_space<vmem>>, %arg11: memref<1x4x240xf32, #tpu.memory_space<vmem>>, %arg12: memref<1x4x240xf32, #tpu.memory_space<vmem>>, %arg13: memref<1x4x240xf32, #tpu.memory_space<vmem>>) attributes {dimension_semantics = [#tpu.dimension_semantics<parallel>], iteration_bounds = array<i64: 2>, scalar_prefetch = 0 : i64, scratch_operands = 0 : i64, tpu.core_type = #tpu.core_type<tc>, window_params = [{pipeline_mode = #tpu.pipeline_mode<synchronous>, transform_indices = @transform_0, window_bounds = array<i64: 4, 4>}, {pipeline_mode = #tpu.pipeline_mode<synchronous>, transform_indices = @transform_1, window_bounds = array<i64: 4, 4>}, {pipeline_mode = #tpu.pipeline_mode<synchronous>, transform_indices = @transform_2, window_bounds = array<i64: 1, 4>}, {pipeline_mode = #tpu.pipeline_mode<synchronous>, transform_indices = @transform_3, window_bounds = array<i64: 4, 4>}, {pipeline_mode = #tpu.pipeline_mode<synchronous>, transform_indices = @transform_4, window_bounds = array<i64: 4, 1>}, {pipeline_mode = #tpu.pipeline_mode<synchronous>, transform_indices = @transform_5, window_bounds = array<i64: 4, 4>}, {pipeline_mode = #tpu.pipeline_mode<synchronous>, transform_indices = @transform_6, window_bounds = array<i64: 4, 4>}, {pipeline_mode = #tpu.pipeline_mode<synchronous>, transform_indices = @transform_7, window_bounds = array<i64: 1, 4>}, {pipeline_mode = #tpu.pipeline_mode<synchronous>, transform_indices = @transform_8, window_bounds = array<i64: 4, 4>}, {pipeline_mode = #tpu.pipeline_mode<synchronous>, transform_indices = @transform_9, window_bounds = array<i64: 4, 1>}, {transform_indices = @transform_10, window_bounds = array<i64: 1, 4, 240>}, {transform_indices = @transform_11, window_bounds = array<i64: 1, 4, 240>}, {transform_indices = @transform_12, window_bounds = array<i64: 1, 4, 240>}]} {
    %c0 = arith.constant 0 : index
    %c0_0 = arith.constant 0 : index
    %c0_1 = arith.constant 0 : index
    %0 = vector.load %arg11[%c0, %c0_0, %c0_1] : memref<1x4x240xf32, #tpu.memory_space<vmem>>, vector<1x4x240xf32>
    %c0_2 = arith.constant 0 : index
    %c0_3 = arith.constant 0 : index
    %c0_4 = arith.constant 0 : index
    %1 = vector.load %arg12[%c0_2, %c0_3, %c0_4] : memref<1x4x240xf32, #tpu.memory_space<vmem>>, vector<1x4x240xf32>
    %cst = arith.constant dense<0.000000e+00> : vector<1x4xf32>
    %2 = vector.multi_reduction <add>, %0, %cst [2] : vector<1x4x240xf32> to vector<1x4xf32>
    %3 = vector.shape_cast %2 : vector<1x4xf32> to vector<1x4x1xf32>
    %cst_5 = arith.constant 0.00416666688 : f32
    %4 = vector.broadcast %cst_5 : f32 to vector<1x4x1xf32>
    %5 = arith.mulf %3, %4 : vector<1x4x1xf32>
    %6 = vector.shape_cast %5 : vector<1x4x1xf32> to vector<4x1xf32>
    %cst_6 = arith.constant dense<0.000000e+00> : vector<1x4xf32>
    %7 = vector.multi_reduction <add>, %1, %cst_6 [2] : vector<1x4x240xf32> to vector<1x4xf32>
    %8 = vector.shape_cast %7 : vector<1x4xf32> to vector<1x4x1xf32>
    %cst_7 = arith.constant 0.00416666688 : f32
    %9 = vector.broadcast %cst_7 : f32 to vector<1x4x1xf32>
    %10 = arith.mulf %8, %9 : vector<1x4x1xf32>
    %11 = vector.shape_cast %10 : vector<1x4x1xf32> to vector<4x1xf32>
    %c0_8 = arith.constant 0 : index
    %c0_9 = arith.constant 0 : index
    %12 = vector.load %arg1[%c0_8, %c0_9] : memref<4x4xf32, #tpu.memory_space<vmem>>, vector<4x4xf32>
    %13 = vector.broadcast %6 : vector<4x1xf32> to vector<4x4xf32>
    %14 = arith.mulf %12, %13 : vector<4x4xf32>
    %c0_10 = arith.constant 0 : index
    %c0_11 = arith.constant 0 : index
    %15 = vector.load %arg2[%c0_10, %c0_11] : memref<4x4xf32, #tpu.memory_space<vmem>>, vector<4x4xf32>
    %16 = vector.broadcast %11 : vector<4x1xf32> to vector<4x4xf32>
    %17 = arith.mulf %15, %16 : vector<4x4xf32>
    %18 = arith.addf %14, %17 : vector<4x4xf32>
    %cst_12 = arith.constant dense<0.000000e+00> : vector<4xf32>
    %19 = vector.multi_reduction <add>, %18, %cst_12 [0] : vector<4x4xf32> to vector<4xf32>
    %20 = vector.shape_cast %19 : vector<4xf32> to vector<1x4xf32>
    %c0_13 = arith.constant 0 : index
    %c0_14 = arith.constant 0 : index
    %21 = vector.load %arg3[%c0_13, %c0_14] : memref<1x4xf32, #tpu.memory_space<vmem>>, vector<1x4xf32>
    %22 = arith.addf %20, %21 : vector<1x4xf32>
    %cst_15 = arith.constant 0.000000e+00 : f32
    %23 = vector.broadcast %cst_15 : f32 to vector<1x4xf32>
    %24 = arith.maximumf %22, %23 : vector<1x4xf32>
    %c0_16 = arith.constant 0 : index
    %c0_17 = arith.constant 0 : index
    %25 = vector.load %arg4[%c0_16, %c0_17] : memref<4x4xf32, #tpu.memory_space<vmem>>, vector<4x4xf32>
    %26 = vector.broadcast %24 : vector<1x4xf32> to vector<4x4xf32>
    %27 = arith.mulf %25, %26 : vector<4x4xf32>
    %cst_18 = arith.constant dense<0.000000e+00> : vector<4xf32>
    %28 = vector.multi_reduction <add>, %27, %cst_18 [1] : vector<4x4xf32> to vector<4xf32>
    %29 = vector.shape_cast %28 : vector<4xf32> to vector<4x1xf32>
    %c0_19 = arith.constant 0 : index
    %c0_20 = arith.constant 0 : index
    %30 = vector.load %arg5[%c0_19, %c0_20] : memref<4x1xf32, #tpu.memory_space<vmem>>, vector<4x1xf32>
    %31 = arith.addf %29, %30 : vector<4x1xf32>
    %cst_21 = arith.constant 0.000000e+00 : f32
    %32 = vector.broadcast %cst_21 : f32 to vector<4x1xf32>
    %33 = arith.subf %32, %31 : vector<4x1xf32>
    %34 = math.exp %33 : vector<4x1xf32>
    %cst_22 = arith.constant 1.000000e+00 : f32
    %35 = vector.broadcast %cst_22 : f32 to vector<4x1xf32>
    %36 = arith.addf %35, %34 : vector<4x1xf32>
    %cst_23 = arith.constant 1.000000e+00 : f32
    %37 = vector.broadcast %cst_23 : f32 to vector<4x1xf32>
    %38 = arith.divf %37, %36 : vector<4x1xf32>
    %39 = vector.shape_cast %38 : vector<4x1xf32> to vector<1x4x1xf32>
    %c0_24 = arith.constant 0 : index
    %c0_25 = arith.constant 0 : index
    %40 = vector.load %arg6[%c0_24, %c0_25] : memref<4x4xf32, #tpu.memory_space<vmem>>, vector<4x4xf32>
    %41 = vector.broadcast %6 : vector<4x1xf32> to vector<4x4xf32>
    %42 = arith.mulf %40, %41 : vector<4x4xf32>
    %c0_26 = arith.constant 0 : index
    %c0_27 = arith.constant 0 : index
    %43 = vector.load %arg7[%c0_26, %c0_27] : memref<4x4xf32, #tpu.memory_space<vmem>>, vector<4x4xf32>
    %44 = vector.broadcast %11 : vector<4x1xf32> to vector<4x4xf32>
    %45 = arith.mulf %43, %44 : vector<4x4xf32>
    %46 = arith.addf %42, %45 : vector<4x4xf32>
    %cst_28 = arith.constant dense<0.000000e+00> : vector<4xf32>
    %47 = vector.multi_reduction <add>, %46, %cst_28 [0] : vector<4x4xf32> to vector<4xf32>
    %48 = vector.shape_cast %47 : vector<4xf32> to vector<1x4xf32>
    %c0_29 = arith.constant 0 : index
    %c0_30 = arith.constant 0 : index
    %49 = vector.load %arg8[%c0_29, %c0_30] : memref<1x4xf32, #tpu.memory_space<vmem>>, vector<1x4xf32>
    %50 = arith.addf %48, %49 : vector<1x4xf32>
    %cst_31 = arith.constant 0.000000e+00 : f32
    %51 = vector.broadcast %cst_31 : f32 to vector<1x4xf32>
    %52 = arith.maximumf %50, %51 : vector<1x4xf32>
    %c0_32 = arith.constant 0 : index
    %c0_33 = arith.constant 0 : index
    %53 = vector.load %arg9[%c0_32, %c0_33] : memref<4x4xf32, #tpu.memory_space<vmem>>, vector<4x4xf32>
    %54 = vector.broadcast %52 : vector<1x4xf32> to vector<4x4xf32>
    %55 = arith.mulf %53, %54 : vector<4x4xf32>
    %cst_34 = arith.constant dense<0.000000e+00> : vector<4xf32>
    %56 = vector.multi_reduction <add>, %55, %cst_34 [1] : vector<4x4xf32> to vector<4xf32>
    %57 = vector.shape_cast %56 : vector<4xf32> to vector<4x1xf32>
    %c0_35 = arith.constant 0 : index
    %c0_36 = arith.constant 0 : index
    %58 = vector.load %arg10[%c0_35, %c0_36] : memref<4x1xf32, #tpu.memory_space<vmem>>, vector<4x1xf32>
    %59 = arith.addf %57, %58 : vector<4x1xf32>
    %cst_37 = arith.constant 0.000000e+00 : f32
    %60 = vector.broadcast %cst_37 : f32 to vector<4x1xf32>
    %61 = arith.subf %60, %59 : vector<4x1xf32>
    %62 = math.exp %61 : vector<4x1xf32>
    %cst_38 = arith.constant 1.000000e+00 : f32
    %63 = vector.broadcast %cst_38 : f32 to vector<4x1xf32>
    %64 = arith.addf %63, %62 : vector<4x1xf32>
    %cst_39 = arith.constant 1.000000e+00 : f32
    %65 = vector.broadcast %cst_39 : f32 to vector<4x1xf32>
    %66 = arith.divf %65, %64 : vector<4x1xf32>
    %67 = vector.shape_cast %66 : vector<4x1xf32> to vector<1x4x1xf32>
    %68 = vector.broadcast %39 : vector<1x4x1xf32> to vector<1x4x240xf32>
    %69 = arith.mulf %68, %0 : vector<1x4x240xf32>
    %70 = vector.broadcast %67 : vector<1x4x1xf32> to vector<1x4x240xf32>
    %71 = arith.mulf %70, %1 : vector<1x4x240xf32>
    %72 = arith.addf %69, %71 : vector<1x4x240xf32>
    %c0_40 = arith.constant 0 : index
    %c0_41 = arith.constant 0 : index
    %c0_42 = arith.constant 0 : index
    %73 = vector.load %arg13[%c0_40, %c0_41, %c0_42] : memref<1x4x240xf32, #tpu.memory_space<vmem>>, vector<1x4x240xf32>
    tpu.vector_store %arg13[%c0_40, %c0_41, %c0_42], %72 {strides = array<i32>} : memref<1x4x240xf32, #tpu.memory_space<vmem>>, vector<1x4x240xf32>,
    return
  }
  func.func @transform_0(%arg0: i32) -> (i32, i32) {
    %c0_i32 = arith.constant 0 : i32
    %c0_i32_0 = arith.constant 0 : i32
    %c0_i32_1 = arith.constant 0 : i32
    return %c0_i32, %c0_i32_0 : i32, i32
  }
  func.func @transform_1(%arg0: i32) -> (i32, i32) {
    %c0_i32 = arith.constant 0 : i32
    %c0_i32_0 = arith.constant 0 : i32
    %c0_i32_1 = arith.constant 0 : i32
    return %c0_i32, %c0_i32_0 : i32, i32
  }
  func.func @transform_2(%arg0: i32) -> (i32, i32) {
    %c0_i32 = arith.constant 0 : i32
    %c0_i32_0 = arith.constant 0 : i32
    %c0_i32_1 = arith.constant 0 : i32
    return %c0_i32, %c0_i32_0 : i32, i32
  }
  func.func @transform_3(%arg0: i32) -> (i32, i32) {
    %c0_i32 = arith.constant 0 : i32
    %c0_i32_0 = arith.constant 0 : i32
    %c0_i32_1 = arith.constant 0 : i32
    return %c0_i32, %c0_i32_0 : i32, i32
  }
  func.func @transform_4(%arg0: i32) -> (i32, i32) {
    %c0_i32 = arith.constant 0 : i32
    %c0_i32_0 = arith.constant 0 : i32
    %c0_i32_1 = arith.constant 0 : i32
    return %c0_i32, %c0_i32_0 : i32, i32
  }
  func.func @transform_5(%arg0: i32) -> (i32, i32) {
    %c0_i32 = arith.constant 0 : i32
    %c0_i32_0 = arith.constant 0 : i32
    %c0_i32_1 = arith.constant 0 : i32
    return %c0_i32, %c0_i32_0 : i32, i32
  }
  func.func @transform_6(%arg0: i32) -> (i32, i32) {
    %c0_i32 = arith.constant 0 : i32
    %c0_i32_0 = arith.constant 0 : i32
    %c0_i32_1 = arith.constant 0 : i32
    return %c0_i32, %c0_i32_0 : i32, i32
  }
  func.func @transform_7(%arg0: i32) -> (i32, i32) {
    %c0_i32 = arith.constant 0 : i32
    %c0_i32_0 = arith.constant 0 : i32
    %c0_i32_1 = arith.constant 0 : i32
    return %c0_i32, %c0_i32_0 : i32, i32
  }
  func.func @transform_8(%arg0: i32) -> (i32, i32) {
    %c0_i32 = arith.constant 0 : i32
    %c0_i32_0 = arith.constant 0 : i32
    %c0_i32_1 = arith.constant 0 : i32
    return %c0_i32, %c0_i32_0 : i32, i32
  }
  func.func @transform_9(%arg0: i32) -> (i32, i32) {
    %c0_i32 = arith.constant 0 : i32
    %c0_i32_0 = arith.constant 0 : i32
    %c0_i32_1 = arith.constant 0 : i32
    return %c0_i32, %c0_i32_0 : i32, i32
  }
  func.func @transform_10(%arg0: i32) -> (i32, i32, i32) {
    %c0_i32 = arith.constant 0 : i32
    %c0_i32_0 = arith.constant 0 : i32
    %c0_i32_1 = arith.constant 0 : i32
    return %arg0, %c0_i32, %c0_i32_0 : i32, i32, i32
  }
  func.func @transform_11(%arg0: i32) -> (i32, i32, i32) {
    %c0_i32 = arith.constant 0 : i32
    %c0_i32_0 = arith.constant 0 : i32
    %c0_i32_1 = arith.constant 0 : i32
    return %arg0, %c0_i32, %c0_i32_0 : i32, i32, i32
  }
  func.func @transform_12(%arg0: i32) -> (i32, i32, i32) {
    %c0_i32 = arith.constant 0 : i32
    %c0_i32_0 = arith.constant 0 : i32
    %c0_i32_1 = arith.constant 0 : i32
    return %arg0, %c0_i32, %c0_i32_0 : i32, i32, i32
  }
}

</mosaic_0001>

<llo_original>
// kernel: tpu_custom_call.1
$region0: #{tpu_custom_call.1}
  #allocation0 [shape = 'u32[]', space=smem, size = 0x4, offset = 0x4, fixed_abs, tag = 'smem constant byte address 0x4 - core index']
  #allocation1 [shape = 'u32[72,128]{1,0:T(1,128)}', space=vmem, size = 0x9000, scoped, tag = 'internal scratch']
  %s0 = inlined_call_operand.hbm [shape: f32[4,4], index: 0, kind: input, shape index: {}]
  %s1 = inlined_call_operand.hbm [shape: f32[4,4], index: 1, kind: input, shape index: {}]
  %s2 = inlined_call_operand.vmem [shape: f32[1,4], index: 2, kind: input, shape index: {}]
  %s3 = inlined_call_operand.hbm [shape: f32[4,4], index: 3, kind: input, shape index: {}]
  %s4 = inlined_call_operand.vmem [shape: f32[4,1], index: 4, kind: input, shape index: {}]
  %s5 = inlined_call_operand.hbm [shape: f32[4,4], index: 5, kind: input, shape index: {}]
  %s6 = inlined_call_operand.hbm [shape: f32[4,4], index: 6, kind: input, shape index: {}]
  %s7 = inlined_call_operand.vmem [shape: f32[1,4], index: 7, kind: input, shape index: {}]
  %s8 = inlined_call_operand.hbm [shape: f32[4,4], index: 8, kind: input, shape index: {}]
  %s9 = inlined_call_operand.vmem [shape: f32[4,1], index: 9, kind: input, shape index: {}]
  %s10 = inlined_call_operand.vmem [shape: f32[2,4,240], index: 10, kind: input, shape index: {}]
  %s11 = inlined_call_operand.hbm [shape: f32[2,4,240], index: 11, kind: input, shape index: {}]
  %s12 = inlined_call_operand.hbm [shape: f32[2,4,240], index: 12, kind: output, shape index: {}]
  %s13 = sld [smem:[#allocation0]]
  $region109: #{tpu_custom_call.1} parent=0
    _
  %s15 = ssub.s32 1, %s13
  %s16 = scalar_select 0, %s15, %s13
  $region1: #{tpu_custom_call.1} parent=0
    #allocation2 [shape = 'u8[2048]{0}', space=vmem, size = 0x800, scoped, tag = 'input window, operand 0, single buffered']
    #allocation3 [shape = 's32[2]{0}', space=sflag, size = 0x8, scoped, tag = 'scoped memory for tpu_custom_call.1']
    #allocation4 [shape = 's32[2]{0}', space=sflag, size = 0x8, scoped, tag = 'scoped memory for tpu_custom_call.1']
    #allocation5 [shape = 'u8[2048]{0}', space=vmem, size = 0x800, scoped, tag = 'input window, operand 1, single buffered']
    #allocation6 [shape = 's32[1]{0}', space=sflag, size = 0x4, scoped, tag = 'scoped memory for tpu_custom_call.1']
    #allocation7 [shape = 'u8[2048]{0}', space=vmem, size = 0x800, scoped, tag = 'input window, operand 3, single buffered']
    #allocation8 [shape = 'u8[2048]{0}', space=vmem, size = 0x800, scoped, tag = 'input window, operand 5, single buffered']
    #allocation9 [shape = 's32[1]{0}', space=sflag, size = 0x4, scoped, tag = 'scoped memory for tpu_custom_call.1']
    #allocation10 [shape = 'u8[2048]{0}', space=vmem, size = 0x800, scoped, tag = 'input window, operand 6, single buffered']
    #allocation11 [shape = 'u8[2048]{0}', space=vmem, size = 0x800, scoped, tag = 'input window, operand 8, single buffered']
    #allocation12 [shape = 's32[1]{0}', space=sflag, size = 0x4, scoped, tag = 'scoped memory for tpu_custom_call.1']
    #allocation13 [shape = 'u8[8192]{0}', space=vmem, size = 0x2000, scoped, tag = 'input window, operand 11']
    #allocation14 [shape = 'u8[8192]{0}', space=vmem, size = 0x2000, scoped, tag = 'output window, operand 0']
    %17 = vsyncpa [#allocation3], 0
    %18 = vsyncpa [#allocation6], 0
    %19 = vsyncpa [#allocation9], 0
    %20 = vsyncpa [#allocation12], 0
    %21 = vsyncpa [#allocation4], 0
    %s22 = scalar_lea.sflag [#allocation4], 1
    %23 = vsyncpa %s22, 0
    loop: start=0, step=1, limit=4
    $region2: #{tpu_custom_call.1} parent=1 // loop_pre_header
      _
    $region3: #{tpu_custom_call.1} parent=1 // loop_header
      %s25 = sphi 0, %s29
      %p26 = scmp.ge.s32.totalorder %s25, 4
      %s33 = sphi 0, %s33
      %s35 = sphi 0, %s33
      %s36 = sphi 0, %s35
      %s50 = sphi 0, %s36
      %s54 = sphi 0, %s54
      %s56 = sphi 0, %s54
      %s57 = sphi 0, %s56
      %s71 = sphi 0, %s57
      %s75 = sphi 0, %s75
      %s77 = sphi 0, %s75
      %s78 = sphi 0, %s77
      %s92 = sphi 0, %s78
      %s96 = sphi 0, %s96
      %s98 = sphi 0, %s96
      %s99 = sphi 0, %s98
      %s113 = sphi 0, %s99
      %s117 = sphi 0, %s117
      %s119 = sphi 0, %s117
      %s120 = sphi 0, %s119
      %s134 = sphi 0, %s120
      %s138 = sphi 0, %s138
      %s140 = sphi 0, %s138
      %s141 = sphi 0, %s140
      %s155 = sphi 0, %s141
      %s159 = sphi 0, %s159
      %s161 = sphi 0, %s159
      %s162 = sphi 0, %s161
      %s176 = sphi 0, %s162
      %s180 = sphi 0, %s180
      %s182 = sphi 0, %s180
      %s183 = sphi 0, %s182
      %s197 = sphi 0, %s183
      %s201 = sphi 0, %s201
      %s203 = sphi 0, %s201
      %s204 = sphi 0, %s203
      %s218 = sphi 0, %s204
      %s222 = sphi 0, %s222
      %s224 = sphi 0, %s222
      %s225 = sphi 0, %s224
      %s239 = sphi 0, %s225
      %s245 = sphi 0, %s247
      %s248 = sphi 0, %s245
      %s249 = sphi 0, %s248
      %s265 = sphi 0, %s249
      %s271 = sphi 0, %s273
      %s274 = sphi 0, %s271
      %s275 = sphi 0, %s274
      %s291 = sphi 0, %s275
      %s297 = sphi 0, %s299
      %s300 = sphi 0, %s297
      %s301 = sphi 0, %s300
      %s317 = sphi 0, %s301
    $region4: #{tpu_custom_call.1} parent=1 // loop_header_branch
      %28 = sbr.rel (%p26) target = $region8
    $region5: #{tpu_custom_call.1} parent=1 // loop_body
      %s30 = ssub.s32 %s25, 1
      %s31 = ssub.s32 %s25, 2
      %s32 = sadd.s32 %s25, 1
      %s34 = sadd.s32 %s33, 1
      %p37 = scmp.eq.s32.totalorder %s25, 1
      %p38 = scmp.ne.s32.totalorder %s33, %s35
      %p39 = scmp.eq.s32.totalorder %s25, 0
      %p40 = por %p38, %p39
      %p41 = scmp.ne.s32.totalorder %s33, %s35
      %p42 = scmp.eq.s32.totalorder %s30, 1
      %p43 = por %p41, %p42
      %p44 = scmp.ne.s32.totalorder %s35, %s36
      %p45 = scmp.eq.s32.totalorder %s30, 0
      %p46 = por %p44, %p45
      %p47 = scmp.ne.s32.totalorder %s35, %s36
      %p48 = scmp.eq.s32.totalorder %s31, 1
      %p49 = por %p47, %p48
      %p51 = scmp.ne.s32.totalorder %s36, %s50
      %p52 = scmp.eq.s32.totalorder %s31, 0
      %p53 = por %p51, %p52
      %s55 = sadd.s32 %s54, 1
      %p58 = scmp.eq.s32.totalorder %s25, 1
      %p59 = scmp.ne.s32.totalorder %s54, %s56
      %p60 = scmp.eq.s32.totalorder %s25, 0
      %p61 = por %p59, %p60
      %p62 = scmp.ne.s32.totalorder %s54, %s56
      %p63 = scmp.eq.s32.totalorder %s30, 1
      %p64 = por %p62, %p63
      %p65 = scmp.ne.s32.totalorder %s56, %s57
      %p66 = scmp.eq.s32.totalorder %s30, 0
      %p67 = por %p65, %p66
      %p68 = scmp.ne.s32.totalorder %s56, %s57
      %p69 = scmp.eq.s32.totalorder %s31, 1
      %p70 = por %p68, %p69
      %p72 = scmp.ne.s32.totalorder %s57, %s71
      %p73 = scmp.eq.s32.totalorder %s31, 0
      %p74 = por %p72, %p73
      %s76 = sadd.s32 %s75, 1
      %p79 = scmp.eq.s32.totalorder %s25, 1
      %p80 = scmp.ne.s32.totalorder %s75, %s77
      %p81 = scmp.eq.s32.totalorder %s25, 0
      %p82 = por %p80, %p81
      %p83 = scmp.ne.s32.totalorder %s75, %s77
      %p84 = scmp.eq.s32.totalorder %s30, 1
      %p85 = por %p83, %p84
      %p86 = scmp.ne.s32.totalorder %s77, %s78
      %p87 = scmp.eq.s32.totalorder %s30, 0
      %p88 = por %p86, %p87
      %p89 = scmp.ne.s32.totalorder %s77, %s78
      %p90 = scmp.eq.s32.totalorder %s31, 1
      %p91 = por %p89, %p90
      %p93 = scmp.ne.s32.totalorder %s78, %s92
      %p94 = scmp.eq.s32.totalorder %s31, 0
      %p95 = por %p93, %p94
      %s97 = sadd.s32 %s96, 1
      %p100 = scmp.eq.s32.totalorder %s25, 1
      %p101 = scmp.ne.s32.totalorder %s96, %s98
      %p102 = scmp.eq.s32.totalorder %s25, 0
      %p103 = por %p101, %p102
      %p104 = scmp.ne.s32.totalorder %s96, %s98
      %p105 = scmp.eq.s32.totalorder %s30, 1
      %p106 = por %p104, %p105
      %p107 = scmp.ne.s32.totalorder %s98, %s99
      %p108 = scmp.eq.s32.totalorder %s30, 0
      %p109 = por %p107, %p108
      %p110 = scmp.ne.s32.totalorder %s98, %s99
      %p111 = scmp.eq.s32.totalorder %s31, 1
      %p112 = por %p110, %p111
      %p114 = scmp.ne.s32.totalorder %s99, %s113
      %p115 = scmp.eq.s32.totalorder %s31, 0
      %p116 = por %p114, %p115
      %s118 = sadd.s32 %s117, 1
      %p121 = scmp.eq.s32.totalorder %s25, 1
      %p122 = scmp.ne.s32.totalorder %s117, %s119
      %p123 = scmp.eq.s32.totalorder %s25, 0
      %p124 = por %p122, %p123
      %p125 = scmp.ne.s32.totalorder %s117, %s119
      %p126 = scmp.eq.s32.totalorder %s30, 1
      %p127 = por %p125, %p126
      %p128 = scmp.ne.s32.totalorder %s119, %s120
      %p129 = scmp.eq.s32.totalorder %s30, 0
      %p130 = por %p128, %p129
      %p131 = scmp.ne.s32.totalorder %s119, %s120
      %p132 = scmp.eq.s32.totalorder %s31, 1
      %p133 = por %p131, %p132
      %p135 = scmp.ne.s32.totalorder %s120, %s134
      %p136 = scmp.eq.s32.totalorder %s31, 0
      %p137 = por %p135, %p136
      %s139 = sadd.s32 %s138, 1
      %p142 = scmp.eq.s32.totalorder %s25, 1
      %p143 = scmp.ne.s32.totalorder %s138, %s140
      %p144 = scmp.eq.s32.totalorder %s25, 0
      %p145 = por %p143, %p144
      %p146 = scmp.ne.s32.totalorder %s138, %s140
      %p147 = scmp.eq.s32.totalorder %s30, 1
      %p148 = por %p146, %p147
      %p149 = scmp.ne.s32.totalorder %s140, %s141
      %p150 = scmp.eq.s32.totalorder %s30, 0
      %p151 = por %p149, %p150
      %p152 = scmp.ne.s32.totalorder %s140, %s141
      %p153 = scmp.eq.s32.totalorder %s31, 1
      %p154 = por %p152, %p153
      %p156 = scmp.ne.s32.totalorder %s141, %s155
      %p157 = scmp.eq.s32.totalorder %s31, 0
      %p158 = por %p156, %p157
      %s160 = sadd.s32 %s159, 1
      %p163 = scmp.eq.s32.totalorder %s25, 1
      %p164 = scmp.ne.s32.totalorder %s159, %s161
      %p165 = scmp.eq.s32.totalorder %s25, 0
      %p166 = por %p164, %p165
      %p167 = scmp.ne.s32.totalorder %s159, %s161
      %p168 = scmp.eq.s32.totalorder %s30, 1
      %p169 = por %p167, %p168
      %p170 = scmp.ne.s32.totalorder %s161, %s162
      %p171 = scmp.eq.s32.totalorder %s30, 0
      %p172 = por %p170, %p171
      %p173 = scmp.ne.s32.totalorder %s161, %s162
      %p174 = scmp.eq.s32.totalorder %s31, 1
      %p175 = por %p173, %p174
      %p177 = scmp.ne.s32.totalorder %s162, %s176
      %p178 = scmp.eq.s32.totalorder %s31, 0
      %p179 = por %p177, %p178
      %s181 = sadd.s32 %s180, 1
      %p184 = scmp.eq.s32.totalorder %s25, 1
      %p185 = scmp.ne.s32.totalorder %s180, %s182
      %p186 = scmp.eq.s32.totalorder %s25, 0
      %p187 = por %p185, %p186
      %p188 = scmp.ne.s32.totalorder %s180, %s182
      %p189 = scmp.eq.s32.totalorder %s30, 1
      %p190 = por %p188, %p189
      %p191 = scmp.ne.s32.totalorder %s182, %s183
      %p192 = scmp.eq.s32.totalorder %s30, 0
      %p193 = por %p191, %p192
      %p194 = scmp.ne.s32.totalorder %s182, %s183
      %p195 = scmp.eq.s32.totalorder %s31, 1
      %p196 = por %p194, %p195
      %p198 = scmp.ne.s32.totalorder %s183, %s197
      %p199 = scmp.eq.s32.totalorder %s31, 0
      %p200 = por %p198, %p199
      %s202 = sadd.s32 %s201, 1
      %p205 = scmp.eq.s32.totalorder %s25, 1
      %p206 = scmp.ne.s32.totalorder %s201, %s203
      %p207 = scmp.eq.s32.totalorder %s25, 0
      %p208 = por %p206, %p207
      %p209 = scmp.ne.s32.totalorder %s201, %s203
      %p210 = scmp.eq.s32.totalorder %s30, 1
      %p211 = por %p209, %p210
      %p212 = scmp.ne.s32.totalorder %s203, %s204
      %p213 = scmp.eq.s32.totalorder %s30, 0
      %p214 = por %p212, %p213
      %p215 = scmp.ne.s32.totalorder %s203, %s204
      %p216 = scmp.eq.s32.totalorder %s31, 1
      %p217 = por %p215, %p216
      %p219 = scmp.ne.s32.totalorder %s204, %s218
      %p220 = scmp.eq.s32.totalorder %s31, 0
      %p221 = por %p219, %p220
      %s223 = sadd.s32 %s222, 1
      %p226 = scmp.eq.s32.totalorder %s25, 1
      %p227 = scmp.ne.s32.totalorder %s222, %s224
      %p228 = scmp.eq.s32.totalorder %s25, 0
      %p229 = por %p227, %p228
      %p230 = scmp.ne.s32.totalorder %s222, %s224
      %p231 = scmp.eq.s32.totalorder %s30, 1
      %p232 = por %p230, %p231
      %p233 = scmp.ne.s32.totalorder %s224, %s225
      %p234 = scmp.eq.s32.totalorder %s30, 0
      %p235 = por %p233, %p234
      %p236 = scmp.ne.s32.totalorder %s224, %s225
      %p237 = scmp.eq.s32.totalorder %s31, 1
      %p238 = por %p236, %p237
      %p240 = scmp.ne.s32.totalorder %s225, %s239
      %p241 = scmp.eq.s32.totalorder %s31, 0
      %p242 = por %p240, %p241
      %s243 = ssub.s32 %s25, %s32
      %p244 = scmp.eq.s32.totalorder %s243, 0
      %s246 = sadd.s32 %s245, 1
      %s247 = scalar_select %p244, %s245, %s246
      %p250 = pneg %p244
      %p251 = scmp.eq.s32.totalorder %s25, 1
      %p252 = por %p250, %p251
      %p253 = scmp.ne.s32.totalorder %s245, %s248
      %p254 = scmp.eq.s32.totalorder %s25, 0
      %p255 = por %p253, %p254
      %p256 = scmp.ne.s32.totalorder %s245, %s248
      %p257 = scmp.eq.s32.totalorder %s30, 1
      %p258 = por %p256, %p257
      %p259 = scmp.ne.s32.totalorder %s248, %s249
      %p260 = scmp.eq.s32.totalorder %s30, 0
      %p261 = por %p259, %p260
      %p262 = scmp.ne.s32.totalorder %s248, %s249
      %p263 = scmp.eq.s32.totalorder %s31, 1
      %p264 = por %p262, %p263
      %p266 = scmp.ne.s32.totalorder %s249, %s265
      %p267 = scmp.eq.s32.totalorder %s31, 0
      %p268 = por %p266, %p267
      %s269 = ssub.s32 %s25, %s32
      %p270 = scmp.eq.s32.totalorder %s269, 0
      %s272 = sadd.s32 %s271, 1
      %s273 = scalar_select %p270, %s271, %s272
      %p276 = pneg %p270
      %p277 = scmp.eq.s32.totalorder %s25, 1
      %p278 = por %p276, %p277
      %p279 = scmp.ne.s32.totalorder %s271, %s274
      %p280 = scmp.eq.s32.totalorder %s25, 0
      %p281 = por %p279, %p280
      %p282 = scmp.ne.s32.totalorder %s271, %s274
      %p283 = scmp.eq.s32.totalorder %s30, 1
      %p284 = por %p282, %p283
      %p285 = scmp.ne.s32.totalorder %s274, %s275
      %p286 = scmp.eq.s32.totalorder %s30, 0
      %p287 = por %p285, %p286
      %p288 = scmp.ne.s32.totalorder %s274, %s275
      %p289 = scmp.eq.s32.totalorder %s31, 1
      %p290 = por %p288, %p289
      %p292 = scmp.ne.s32.totalorder %s275, %s291
      %p293 = scmp.eq.s32.totalorder %s31, 0
      %p294 = por %p292, %p293
      %s295 = ssub.s32 %s25, %s32
      %p296 = scmp.eq.s32.totalorder %s295, 0
      %s298 = sadd.s32 %s297, 1
      %s299 = scalar_select %p296, %s297, %s298
      %p302 = pneg %p296
      %p303 = scmp.eq.s32.totalorder %s25, 1
      %p304 = por %p302, %p303
      %p305 = scmp.ne.s32.totalorder %s297, %s300
      %p306 = scmp.eq.s32.totalorder %s25, 0
      %p307 = por %p305, %p306
      %p308 = scmp.ne.s32.totalorder %s297, %s300
      %p309 = scmp.eq.s32.totalorder %s30, 1
      %p310 = por %p308, %p309
      %p311 = scmp.ne.s32.totalorder %s300, %s301
      %p312 = scmp.eq.s32.totalorder %s30, 0
      %p313 = por %p311, %p312
      %p314 = scmp.ne.s32.totalorder %s300, %s301
      %p315 = scmp.eq.s32.totalorder %s31, 1
      %p316 = por %p314, %p315
      %p318 = scmp.ne.s32.totalorder %s301, %s317
      %p319 = scmp.eq.s32.totalorder %s31, 0
      %p320 = por %p318, %p319
      %p321 = scmp.le.s32.totalorder 1, %s25
      %p322 = scmp.lt.s32.totalorder %s25, 3
      %p323 = pnand %p321, %p322
      %p324 = pneg %p323
      // Predicated region
      $region9: #{tpu_custom_call.1} parent=5 // pred_check
        _
      $region10: #{tpu_custom_call.1} parent=5 // pred_check_branch
        %326 = sbr.rel (%p323) target = $region12
      $region11: #{tpu_custom_call.1} parent=5 // pred_region
        %s327 = ssub.s32 %s25, 1
        // Predicated region
        $region13: #{tpu_custom_call.1} parent=11 // pred_check
          %p328 = pneg %p46
        $region14: #{tpu_custom_call.1} parent=11 // pred_check_branch
          %330 = sbr.rel (%p328) target = $region16
        $region15: #{tpu_custom_call.1} parent=11 // pred_region
          %332 = vsyncadd [#allocation3], 0
          %s334 = sshll.u32 %s0, 4
          %s335 = int_to_ptr.hbm [resolvable:$true] %s334
          %s336 = sshll.u32 [#allocation2], 4
          %s337 = int_to_ptr.vmem [resolvable:$true] %s336
          %339 = dma.hbm_to_vmem [thread:$0]  %s335, 64, %s337, [#allocation3]
        $region16: #{tpu_custom_call.1} parent=11 // pred_fallthru
          _
        // Predicated region
        $region17: #{tpu_custom_call.1} parent=11 // pred_check
          %p340 = pneg %p67
        $region18: #{tpu_custom_call.1} parent=11 // pred_check_branch
          %342 = sbr.rel (%p340) target = $region20
        $region19: #{tpu_custom_call.1} parent=11 // pred_region
          %344 = vsyncadd [#allocation6], 0
          %s346 = sshll.u32 %s1, 4
          %s347 = int_to_ptr.hbm [resolvable:$true] %s346
          %s348 = sshll.u32 [#allocation5], 4
          %s349 = int_to_ptr.vmem [resolvable:$true] %s348
          %351 = dma.hbm_to_vmem [thread:$0]  %s347, 64, %s349, [#allocation6]
        $region20: #{tpu_custom_call.1} parent=11 // pred_fallthru
          _
        // Predicated region
        $region21: #{tpu_custom_call.1} parent=11 // pred_check
          %p352 = pneg %p88
        $region22: #{tpu_custom_call.1} parent=11 // pred_check_branch
          %354 = sbr.rel (%p352) target = $region24
        $region23: #{tpu_custom_call.1} parent=11 // pred_region
          _
        $region24: #{tpu_custom_call.1} parent=11 // pred_fallthru
          _
        // Predicated region
        $region25: #{tpu_custom_call.1} parent=11 // pred_check
          %p355 = pneg %p109
        $region26: #{tpu_custom_call.1} parent=11 // pred_check_branch
          %357 = sbr.rel (%p355) target = $region28
        $region27: #{tpu_custom_call.1} parent=11 // pred_region
          %359 = vsyncadd [#allocation6], 0
          %s361 = sshll.u32 %s3, 4
          %s362 = int_to_ptr.hbm [resolvable:$true] %s361
          %s363 = sshll.u32 [#allocation7], 4
          %s364 = int_to_ptr.vmem [resolvable:$true] %s363
          %366 = dma.hbm_to_vmem [thread:$0]  %s362, 64, %s364, [#allocation6]
        $region28: #{tpu_custom_call.1} parent=11 // pred_fallthru
          _
        // Predicated region
        $region29: #{tpu_custom_call.1} parent=11 // pred_check
          %p367 = pneg %p130
        $region30: #{tpu_custom_call.1} parent=11 // pred_check_branch
          %369 = sbr.rel (%p367) target = $region32
        $region31: #{tpu_custom_call.1} parent=11 // pred_region
          _
        $region32: #{tpu_custom_call.1} parent=11 // pred_fallthru
          _
        // Predicated region
        $region33: #{tpu_custom_call.1} parent=11 // pred_check
          %p370 = pneg %p151
        $region34: #{tpu_custom_call.1} parent=11 // pred_check_branch
          %372 = sbr.rel (%p370) target = $region36
        $region35: #{tpu_custom_call.1} parent=11 // pred_region
          %374 = vsyncadd [#allocation9], 0
          %s376 = sshll.u32 %s5, 4
          %s377 = int_to_ptr.hbm [resolvable:$true] %s376
          %s378 = sshll.u32 [#allocation8], 4
          %s379 = int_to_ptr.vmem [resolvable:$true] %s378
          %381 = dma.hbm_to_vmem [thread:$0]  %s377, 64, %s379, [#allocation9]
        $region36: #{tpu_custom_call.1} parent=11 // pred_fallthru
          _
        // Predicated region
        $region37: #{tpu_custom_call.1} parent=11 // pred_check
          %p382 = pneg %p172
        $region38: #{tpu_custom_call.1} parent=11 // pred_check_branch
          %384 = sbr.rel (%p382) target = $region40
        $region39: #{tpu_custom_call.1} parent=11 // pred_region
          %386 = vsyncadd [#allocation9], 0
          %s388 = sshll.u32 %s6, 4
          %s389 = int_to_ptr.hbm [resolvable:$true] %s388
          %s390 = sshll.u32 [#allocation10], 4
          %s391 = int_to_ptr.vmem [resolvable:$true] %s390
          %393 = dma.hbm_to_vmem [thread:$0]  %s389, 64, %s391, [#allocation9]
        $region40: #{tpu_custom_call.1} parent=11 // pred_fallthru
          _
        // Predicated region
        $region41: #{tpu_custom_call.1} parent=11 // pred_check
          %p394 = pneg %p193
        $region42: #{tpu_custom_call.1} parent=11 // pred_check_branch
          %396 = sbr.rel (%p394) target = $region44
        $region43: #{tpu_custom_call.1} parent=11 // pred_region
          _
        $region44: #{tpu_custom_call.1} parent=11 // pred_fallthru
          _
        // Predicated region
        $region45: #{tpu_custom_call.1} parent=11 // pred_check
          %p397 = pneg %p214
        $region46: #{tpu_custom_call.1} parent=11 // pred_check_branch
          %399 = sbr.rel (%p397) target = $region48
        $region47: #{tpu_custom_call.1} parent=11 // pred_region
          %401 = vsyncadd [#allocation12], 0
          %s403 = sshll.u32 %s8, 4
          %s404 = int_to_ptr.hbm [resolvable:$true] %s403
          %s405 = sshll.u32 [#allocation11], 4
          %s406 = int_to_ptr.vmem [resolvable:$true] %s405
          %408 = dma.hbm_to_vmem [thread:$0]  %s404, 64, %s406, [#allocation12]
        $region48: #{tpu_custom_call.1} parent=11 // pred_fallthru
          _
        // Predicated region
        $region49: #{tpu_custom_call.1} parent=11 // pred_check
          %p409 = pneg %p235
        $region50: #{tpu_custom_call.1} parent=11 // pred_check_branch
          %411 = sbr.rel (%p409) target = $region52
        $region51: #{tpu_custom_call.1} parent=11 // pred_region
          _
        $region52: #{tpu_custom_call.1} parent=11 // pred_fallthru
          _
      $region12: #{tpu_custom_call.1} parent=5 // pred_fallthru
        _
      %p412 = scmp.lt.s32.totalorder %s25, 2
      // Predicated region
      $region53: #{tpu_custom_call.1} parent=5 // pred_check
        %p413 = pneg %p412
      $region54: #{tpu_custom_call.1} parent=5 // pred_check_branch
        %415 = sbr.rel (%p413) target = $region56
      $region55: #{tpu_custom_call.1} parent=5 // pred_region
        // Predicated region
        $region57: #{tpu_custom_call.1} parent=55 // pred_check
          %p416 = pneg %p255
        $region58: #{tpu_custom_call.1} parent=55 // pred_check_branch
          %418 = sbr.rel (%p416) target = $region60
        $region59: #{tpu_custom_call.1} parent=55 // pred_region
          %p419 = scmp.lt.s32.totalorder %s25, 1
          %s420 = scalar_select %p419, %s25, 1
          %s421 = smul.addr %s420, 2
          %s422 = smul.addr %s421, 4
          %s423 = scalar_lea.vmem %s10, %s422
        $region60: #{tpu_custom_call.1} parent=55 // pred_fallthru
          _
        // Predicated region
        $region61: #{tpu_custom_call.1} parent=55 // pred_check
          %p424 = pneg %p281
        $region62: #{tpu_custom_call.1} parent=55 // pred_check_branch
          %426 = sbr.rel (%p424) target = $region64
        $region63: #{tpu_custom_call.1} parent=55 // pred_region
          %s427 = sand.u32 %s25, 1
          %s428 = scalar_lea.sflag [#allocation3], %s427
          %s429 = sand.u32 %s271, 1
          %s430 = smul.addr %s429, 8
          %s431 = scalar_lea.vmem [#allocation13], %s430
          %433 = vsyncadd %s428, 0
          %s434 = smul.addr %s25, 2
          %s435 = smul.addr %s434, 4
          %s436 = scalar_lea.hbm %s11, %s435
          %s438 = sshll.u32 %s436, 4
          %s439 = int_to_ptr.hbm [resolvable:$true] %s438
          %s440 = sshll.u32 %s431, 4
          %s441 = int_to_ptr.vmem [resolvable:$true] %s440
          %443 = dma.hbm_to_vmem [thread:$0]  %s439, 128, %s441, %s428
        $region64: #{tpu_custom_call.1} parent=55 // pred_fallthru
          _
      $region56: #{tpu_custom_call.1} parent=5 // pred_fallthru
        _
      %p444 = scmp.le.s32.totalorder 1, %s25
      %p445 = scmp.lt.s32.totalorder %s25, 3
      %p446 = pnand %p444, %p445
      %p447 = pneg %p446
      // Predicated region
      $region65: #{tpu_custom_call.1} parent=5 // pred_check
        _
      $region66: #{tpu_custom_call.1} parent=5 // pred_check_branch
        %449 = sbr.rel (%p446) target = $region68
      $region67: #{tpu_custom_call.1} parent=5 // pred_region
        %s450 = ssub.s32 %s25, 1
        // Predicated region
        $region69: #{tpu_custom_call.1} parent=67 // pred_check
          %p451 = pneg %p46
        $region70: #{tpu_custom_call.1} parent=67 // pred_check_branch
          %453 = sbr.rel (%p451) target = $region72
        $region71: #{tpu_custom_call.1} parent=67 // pred_region
          %455 = dma.done [#allocation3], 64
        $region72: #{tpu_custom_call.1} parent=67 // pred_fallthru
          _
        // Predicated region
        $region73: #{tpu_custom_call.1} parent=67 // pred_check
          %p456 = pneg %p67
        $region74: #{tpu_custom_call.1} parent=67 // pred_check_branch
          %458 = sbr.rel (%p456) target = $region76
        $region75: #{tpu_custom_call.1} parent=67 // pred_region
          %460 = dma.done [#allocation6], 64
        $region76: #{tpu_custom_call.1} parent=67 // pred_fallthru
          _
        // Predicated region
        $region77: #{tpu_custom_call.1} parent=67 // pred_check
          %p461 = pneg %p109
        $region78: #{tpu_custom_call.1} parent=67 // pred_check_branch
          %463 = sbr.rel (%p461) target = $region80
        $region79: #{tpu_custom_call.1} parent=67 // pred_region
          %465 = dma.done [#allocation6], 64
        $region80: #{tpu_custom_call.1} parent=67 // pred_fallthru
          _
        // Predicated region
        $region81: #{tpu_custom_call.1} parent=67 // pred_check
          %p466 = pneg %p151
        $region82: #{tpu_custom_call.1} parent=67 // pred_check_branch
          %468 = sbr.rel (%p466) target = $region84
        $region83: #{tpu_custom_call.1} parent=67 // pred_region
          %470 = dma.done [#allocation9], 64
        $region84: #{tpu_custom_call.1} parent=67 // pred_fallthru
          _
        // Predicated region
        $region85: #{tpu_custom_call.1} parent=67 // pred_check
          %p471 = pneg %p172
        $region86: #{tpu_custom_call.1} parent=67 // pred_check_branch
          %473 = sbr.rel (%p471) target = $region88
        $region87: #{tpu_custom_call.1} parent=67 // pred_region
          %475 = dma.done [#allocation9], 64
        $region88: #{tpu_custom_call.1} parent=67 // pred_fallthru
          _
        // Predicated region
        $region89: #{tpu_custom_call.1} parent=67 // pred_check
          %p476 = pneg %p214
        $region90: #{tpu_custom_call.1} parent=67 // pred_check_branch
          %478 = sbr.rel (%p476) target = $region92
        $region91: #{tpu_custom_call.1} parent=67 // pred_region
          %480 = dma.done [#allocation12], 64
        $region92: #{tpu_custom_call.1} parent=67 // pred_fallthru
          _
        %s481 = sand.u32 %s30, 1
        %s482 = scalar_lea.sflag [#allocation3], %s481
        %s483 = sand.u32 %s274, 1
        %s484 = smul.addr %s483, 8
        %s485 = scalar_lea.vmem [#allocation13], %s484
        // Predicated region
        $region93: #{tpu_custom_call.1} parent=67 // pred_check
          %p486 = pneg %p287
        $region94: #{tpu_custom_call.1} parent=67 // pred_check_branch
          %488 = sbr.rel (%p486) target = $region96
        $region95: #{tpu_custom_call.1} parent=67 // pred_region
          %490 = dma.done %s482, 128
        $region96: #{tpu_custom_call.1} parent=67 // pred_fallthru
          _
        %p491 = pneg %p46
        %p492 = pneg %p43
        %p493 = pneg %p67
        %p494 = pneg %p64
        %p495 = pneg %p88
        %p496 = pneg %p85
        %p497 = pneg %p109
        %p498 = pneg %p106
        %p499 = pneg %p130
        %p500 = pneg %p127
        %p501 = pneg %p151
        %p502 = pneg %p148
        %p503 = pneg %p172
        %p504 = pneg %p169
        %p505 = pneg %p193
        %p506 = pneg %p190
        %p507 = pneg %p214
        %p508 = pneg %p211
        %p509 = pneg %p235
        %p510 = pneg %p232
        %p511 = scmp.lt.s32.totalorder %s30, 1
        %s512 = scalar_select %p511, %s30, 1
        %s513 = smul.addr %s512, 2
        %s514 = smul.addr %s513, 4
        %s515 = scalar_lea.vmem %s10, %s514
        %p516 = pneg %p261
        %p517 = pneg %p258
        %s518 = sand.u32 %s30, 1
        %s519 = scalar_lea.sflag [#allocation3], %s518
        %s520 = sand.u32 %s274, 1
        %s521 = smul.addr %s520, 8
        %s522 = scalar_lea.vmem [#allocation13], %s521
        %p523 = pneg %p287
        %p524 = pneg %p284
        %p525 = pneg %p313
        %p526 = pneg %p310
        %s527 = sand.u32 %s300, 1
        %s528 = scalar_lea.sflag [#allocation4], %s527
        %s529 = sand.u32 %s300, 1
        %s530 = smul.addr %s529, 8
        %s531 = scalar_lea.vmem [#allocation14], %s530
        %p532 = scmp.lt.s32.totalorder %s30, 1
        %s533 = scalar_select %p532, %s30, 1
        %s534 = smul.addr %s533, 2
        %s535 = smul.addr %s534, 4
        %s536 = scalar_lea.vmem %s10, %s535
        %v537 = vld [vmem:[%s536] sm:$0xff]
        %v538 = vld [vmem:[%s485] sm:$0xff]
        %540 = vst [vmem:[#allocation1] ss:$2 sm:$0xff] %v537
        %v541 = vld.sshfl [vmem:[#allocation1] sm:$0xff pattern:$0x75316420]
        %v542 = vld.sshfl [vmem:[#allocation1 + $0x8] sm:$0xff pattern:$0x75316420]
        %vm545 = vcmask 1043456
        %v546 = vsel %vm545, %v541, 0.0
        %vm547 = vcmask 912384
        %v548 = vsel %vm547, %v542, 0.0
        %v549 = vadd.f32 %v546, %v548
        %550 = vadd.xlane.f32.xlu0 %v549
        %v551 = vpop.xlane.xlu0 %550
        %v552 = vmul.f32 %v551, 0.004166667
        %554 = vst [vmem:[#allocation1] ss:$2 sm:$0xff] %v538
        %v555 = vld.sshfl [vmem:[#allocation1] sm:$0xff pattern:$0x75316420]
        %v556 = vld.sshfl [vmem:[#allocation1 + $0x8] sm:$0xff pattern:$0x75316420]
        %v559 = vsel %vm545, %v555, 0.0
        %v560 = vsel %vm547, %v556, 0.0
        %v561 = vadd.f32 %v559, %v560
        %562 = vadd.xlane.f32.xlu0 %v561
        %v563 = vpop.xlane.xlu0 %562
        %v564 = vmul.f32 %v563, 0.004166667
        %v565 = vld [vmem:[#allocation2] sm:$0xf]
        %v566 = vmul.f32 %v565, %v552
        %v567 = vld [vmem:[#allocation5] sm:$0xf]
        %v568 = vmul.f32 %v567, %v564
        %v569 = vadd.f32 %v566, %v568
        %vm570 = vcmask 27648
        %v571 = vsel %vm570, %v569, 0.0
        %v572 = vrot.slane %v571, 4
        %v573 = vadd.f32 %v571, %v572
        %v574 = vrot.slane %v573, 2
        %v575 = vadd.f32 %v573, %v574
        %v576 = vrot.slane %v575, 1
        %v577 = vadd.f32 %v575, %v576
        %v578 = vld [vmem:[%s2] sm:$0x1]
        %v579 = vadd.f32 %v577, %v578
        %v580 = vmax.f32 %v579, 0.0
        %v581 = vld [vmem:[#allocation7] sm:$0xf]
        %v582 = vperm.slane %v580, 0
        %v583 = vmul.f32 %v581, %v582
        %v584 = vsel %vm570, %v583, 0.0
        %585 = vadd.xlane.f32.xlu0 %v584
        %v586 = vpop.xlane.xlu0 %585
        %v587 = vld [vmem:[%s4] sm:$0xf]
        %v588 = vadd.f32 %v586, %v587
        %v589 = vsub.f32 0.0, %v588
        %v590 = vmul.f32 %v589, 1.442695
        %v591 = vpow.pop %v590
        %v592 = vadd.f32 %v591, 1.0
        %v593 = vrcp.pop %v592
        %v594 = vmul.f32 %v592, %v593
        %v595 = vsub.f32 1.0, %v594
        %v596 = vmul.f32 %v593, %v595
        %v597 = vadd.f32 %v593, %v596
        %vm598 = vweird.f32 %v592
        %vm599 = vweird.f32 %v593
        %vm600 = vmor %vm598, %vm599
        %v601 = vsel %vm600, %v593, %v597
        %v602 = vand.u32 2147483647, %v592
        %vm603 = vcmp.eq.f32.partialorder %v602, 8.507059e+37
        %v604 = vand.u32 %v592, 2147483648
        %v605 = vor.u32 1.1754944e-38, %v604
        %v606 = vsel %vm603, %v605, %v601
        %v607 = vmul.f32 1.0, %v606
        %v608 = vld [vmem:[#allocation8] sm:$0xf]
        %v609 = vmul.f32 %v608, %v552
        %v610 = vld [vmem:[#allocation10] sm:$0xf]
        %v611 = vmul.f32 %v610, %v564
        %v612 = vadd.f32 %v609, %v611
        %v613 = vsel %vm570, %v612, 0.0
        %v614 = vrot.slane %v613, 4
        %v615 = vadd.f32 %v613, %v614
        %v616 = vrot.slane %v615, 2
        %v617 = vadd.f32 %v615, %v616
        %v618 = vrot.slane %v617, 1
        %v619 = vadd.f32 %v617, %v618
        %v620 = vld [vmem:[%s7] sm:$0x1]
        %v621 = vadd.f32 %v619, %v620
        %v622 = vmax.f32 %v621, 0.0
        %v623 = vld [vmem:[#allocation11] sm:$0xf]
        %v624 = vperm.slane %v622, 0
        %v625 = vmul.f32 %v623, %v624
        %v626 = vsel %vm570, %v625, 0.0
        %627 = vadd.xlane.f32.xlu0 %v626
        %v628 = vpop.xlane.xlu0 %627
        %v629 = vld [vmem:[%s9] sm:$0xf]
        %v630 = vadd.f32 %v628, %v629
        %v631 = vsub.f32 0.0, %v630
        %v632 = vmul.f32 %v631, 1.442695
        %v633 = vpow.pop %v632
        %v634 = vadd.f32 %v633, 1.0
        %v635 = vrcp.pop %v634
        %v636 = vmul.f32 %v634, %v635
        %v637 = vsub.f32 1.0, %v636
        %v638 = vmul.f32 %v635, %v637
        %v639 = vadd.f32 %v635, %v638
        %vm640 = vweird.f32 %v634
        %vm641 = vweird.f32 %v635
        %vm642 = vmor %vm640, %vm641
        %v643 = vsel %vm642, %v635, %v639
        %v644 = vand.u32 2147483647, %v634
        %vm645 = vcmp.eq.f32.partialorder %v644, 8.507059e+37
        %v646 = vand.u32 %v634, 2147483648
        %v647 = vor.u32 1.1754944e-38, %v646
        %v648 = vsel %vm645, %v647, %v643
        %v649 = vmul.f32 1.0, %v648
        %651 = vset.pattern.permute.xlu0 0
        %652 = vperm.xlu0 %651, %v607
        %v653 = vpop.permute.xlu0 %652
        %655 = vst [vmem:[#allocation1] ss:$2 sm:$0xff] %v537
        %v656 = vld.sshfl [vmem:[#allocation1] sm:$0xff pattern:$0x75316420]
        %v657 = vld.sshfl [vmem:[#allocation1 + $0x8] sm:$0xff pattern:$0x75316420]
        %v660 = vmul.f32 %v653, %v656
        %v661 = vmul.f32 %v653, %v657
        %663 = vset.pattern.permute.xlu0 0
        %664 = vperm.xlu0 %663, %v649
        %v665 = vpop.permute.xlu0 %664
        %667 = vst [vmem:[#allocation1] ss:$2 sm:$0xff] %v538
        %v668 = vld.sshfl [vmem:[#allocation1] sm:$0xff pattern:$0x75316420]
        %v669 = vld.sshfl [vmem:[#allocation1 + $0x8] sm:$0xff pattern:$0x75316420]
        %v672 = vmul.f32 %v665, %v668
        %v673 = vmul.f32 %v665, %v669
        %v674 = vadd.f32 %v660, %v672
        %v675 = vadd.f32 %v661, %v673
        %v678 = vrot.slane %v675, 4
        %v679 = vsel %vm545, %v674, %v678
        %vm681 = vcmask 916484
        %vm682 = vmor %vm681, %vm545
        %683 = vst.msk [vmem:[%s531] sm:$0xff] %vm682, %v679
        %s684 = sand.u32 %s300, 1
        %s685 = scalar_lea.sflag [#allocation4], %s684
        %s686 = sand.u32 %s300, 1
        %s687 = smul.addr %s686, 8
        %s688 = scalar_lea.vmem [#allocation14], %s687
        // Predicated region
        $region97: #{tpu_custom_call.1} parent=67 // pred_check
          %p689 = pneg %p310
        $region98: #{tpu_custom_call.1} parent=67 // pred_check_branch
          %691 = sbr.rel (%p689) target = $region100
        $region99: #{tpu_custom_call.1} parent=67 // pred_region
          %693 = vsyncadd %s685, 0
          %s694 = smul.addr %s30, 2
          %s695 = smul.addr %s694, 4
          %s696 = scalar_lea.hbm %s12, %s695
          %s698 = sshll.u32 %s688, 4
          %s699 = int_to_ptr.vmem [resolvable:$true] %s698
          %s700 = sshll.u32 %s696, 4
          %s701 = int_to_ptr.hbm [resolvable:$true] %s700
          %703 = dma.vmem_to_hbm [thread:$0]  %s699, 128, %s701, %s685
        $region100: #{tpu_custom_call.1} parent=67 // pred_fallthru
          _
      $region68: #{tpu_custom_call.1} parent=5 // pred_fallthru
        _
      %p704 = scmp.le.s32.totalorder 2, %s25
      // Predicated region
      $region101: #{tpu_custom_call.1} parent=5 // pred_check
        %p705 = pneg %p704
      $region102: #{tpu_custom_call.1} parent=5 // pred_check_branch
        %707 = sbr.rel (%p705) target = $region104
      $region103: #{tpu_custom_call.1} parent=5 // pred_region
        %s708 = ssub.s32 %s25, 2
        // Predicated region
        $region105: #{tpu_custom_call.1} parent=103 // pred_check
          %p709 = pneg %p316
        $region106: #{tpu_custom_call.1} parent=103 // pred_check_branch
          %711 = sbr.rel (%p709) target = $region108
        $region107: #{tpu_custom_call.1} parent=103 // pred_region
          %s712 = sand.u32 %s301, 1
          %s713 = scalar_lea.sflag [#allocation4], %s712
          %s714 = sand.u32 %s301, 1
          %s715 = smul.addr %s714, 8
          %s716 = scalar_lea.vmem [#allocation14], %s715
          %718 = dma.done %s713, 128
        $region108: #{tpu_custom_call.1} parent=103 // pred_fallthru
          _
      $region104: #{tpu_custom_call.1} parent=5 // pred_fallthru
        _
    $region6: #{tpu_custom_call.1} parent=1 // loop_footer
      %s29 = sadd.s32 1, %s25
    $region7: #{tpu_custom_call.1} parent=1 // loop_footer_branch
      %24 = sbr.rel target = $region3
    $region8: #{tpu_custom_call.1} parent=1 // loop_exit
      _
    %719 = vsyncpa [#allocation3], 1
    %s720 = scalar_lea.sflag [#allocation3], 1
    %721 = vsyncpa %s720, 1
    %722 = vsyncpa [#allocation6], 1
    %723 = vsyncpa [#allocation9], 1
    %724 = vsyncpa [#allocation12], 1
    %725 = vsyncpa [#allocation4], 1
    %s726 = scalar_lea.sflag [#allocation4], 1
    %727 = vsyncpa %s726, 1

</llo_original>
